<compile_context>
chip_gen: v7x
topology: tpu7x:2x2x1
jax: 0.10.0
libtpu: 0.0.40
codegen_flags: <defaults>
</compile_context>

<pallas_src>
import functools

import jax
import jax.numpy as jnp
import numpy as np
from jax import lax
from jax.experimental import pallas as pl
from jax.experimental.pallas import tpu as pltpu

LN_EPS = 1e-5  # torch_geometric LayerNorm default eps


def _round_up(x, m):
    return ((x + m - 1) // m) * m


def _cdiv(a, b):
    return (a + b - 1) // b


def _tpu_vmem_capacity_bytes():
    """Generation-aware VMEM size (v5e/v6e 128 MiB, v7x 64 MiB); safe fallback."""
    try:
        return int(pltpu.get_tpu_info().vmem_capacity_bytes)
    except Exception:
        return 64 * 1024 * 1024  # conservative: v7x per-TensorCore VMEM


def _vmem_limit_bytes(block_bytes, vmem_cap):
    hi = max(32 << 20, int(0.85 * vmem_cap))
    want = 2 * block_bytes + (16 << 20)
    return int(min(hi, max(32 << 20, want)))


# ---------------------------------------------------------------------------
# Kernel 1: neighbor mean-aggregation for ALL edge types, tiled & pipelined.
#   n_src_tiles : [E] int32 (scalar prefetch)  valid src tiles per edge type
#   adj_all     : [E, N_dst_pad, N_src_pad] bf16  row-normalized adjacency (scatter-mean)
#   xs_all      : [E, N_src_pad, T*F_in]    bf16  flattened src features
#   out         : [E, N_dst_pad, T*F_in]    bf16  (f32 VMEM accumulation)
# grid = (dst_tiles [parallel], E, src_tiles [reduction, last])
# ---------------------------------------------------------------------------
def _aggregate_kernel(nt_ref, adj_ref, xs_ref, o_ref, acc_ref):
    e = pl.program_id(1)
    s = pl.program_id(2)

    @pl.when(s == 0)
    def _():
        acc_ref[...] = jnp.zeros_like(acc_ref)

    # Skip padded src tiles of the smaller edge types (index_map is clamped so the
    # DMA'd block does not advance either -> copy elided, MXU step skipped).
    @pl.when(s < nt_ref[e])
    def _():
        acc_ref[...] += jnp.dot(adj_ref[...], xs_ref[...],
                                preferred_element_type=jnp.float32)

    @pl.when(s == pl.num_programs(2) - 1)
    def _():
        o_ref[...] = acc_ref[...].astype(o_ref.dtype)


def aggregate_all(n_src_tiles, adj_all, xs_all, *, tile_d, tile_s, vmem_cap):
    n_edge, n_dst_pad, n_src_pad = adj_all.shape
    tf = xs_all.shape[-1]
    dst_tiles = n_dst_pad // tile_d
    src_tiles = n_src_pad // tile_s
    grid = (dst_tiles, n_edge, src_tiles)

    block_bytes = (2 * tile_d * tile_s * 2 + 2 * tile_s * tf * 2
                   + 2 * tile_d * tf * 2 + tile_d * tf * 4)
    flops = int(2 * n_edge * n_dst_pad * n_src_pad * tf)
    bytes_accessed = int(adj_all.size * 2 + dst_tiles * xs_all.size * 2
                         + n_edge * n_dst_pad * tf * 2)

    def adj_map(i, e, s, nt):
        return (e, i, jnp.minimum(s, nt[e] - 1))

    def xs_map(i, e, s, nt):
        return (e, jnp.minimum(s, nt[e] - 1), 0)

    def out_map(i, e, s, nt):
        return (e, i, 0)

    return pl.pallas_call(
        _aggregate_kernel,
        out_shape=jax.ShapeDtypeStruct((n_edge, n_dst_pad, tf), jnp.bfloat16),
        grid_spec=pltpu.PrefetchScalarGridSpec(
            num_scalar_prefetch=1,
            grid=grid,
            in_specs=[
                pl.BlockSpec((None, tile_d, tile_s), adj_map),   # leading E squeezed
                pl.BlockSpec((None, tile_s, tf), xs_map),
            ],
            out_specs=pl.BlockSpec((None, tile_d, tf), out_map),
            scratch_shapes=[pltpu.VMEM((tile_d, tf), jnp.float32)],
        ),
        compiler_params=pltpu.CompilerParams(
            dimension_semantics=("parallel", "arbitrary", "arbitrary"),
            vmem_limit_bytes=_vmem_limit_bytes(block_bytes, vmem_cap)),
        cost_estimate=pl.CostEstimate(flops=flops, transcendentals=0,
                                      bytes_accessed=bytes_accessed),
    )(n_src_tiles, adj_all, xs_all)


# ---------------------------------------------------------------------------
# Kernel 2: fused SAGE linears + sum over edge types + relu + LayerNorm.
#   agg2   : [E, NT_pad, F_in] bf16   per-edge aggregated neighbor features
#   xd2    : [NT_pad, F_in]    bf16   destination node features
#   wl_all : [E, F_in, F_out]  bf16
#   wr_sum : [F_in, F_out]     bf16   sum_e W_r_e   (self term computed once)
#   b_sum  : [1, F_out]        f32    sum_e b_e
#   gamma/beta : [1, F_out]    f32    LayerNorm(mode='node') params
#   out    : [NT_pad, F_out]   bf16
# grid = (row_tiles [parallel],): one step per row tile, edge sum unrolled in-kernel
# into a local f32 accumulator (no per-edge output read-modify-write).
# ---------------------------------------------------------------------------
def _sage_combine_kernel(agg_ref, xd_ref, wl_ref, wrs_ref, bs_ref, g_ref, b_ref,
                         o_ref, *, n_edge, is_output_layer):
    acc = jnp.dot(xd_ref[...], wrs_ref[...], preferred_element_type=jnp.float32)
    acc = acc + bs_ref[...]
    for e in range(n_edge):          # static unroll over edge types
        acc = acc + jnp.dot(agg_ref[e], wl_ref[e],
                            preferred_element_type=jnp.float32)

    h = jnp.maximum(acc, 0.0)        # dropout (identity, eval) then relu
    if is_output_layer:
        o_ref[...] = h.astype(o_ref.dtype)
    else:
        mean = jnp.mean(h, axis=-1, keepdims=True)
        var = jnp.mean(jnp.square(h - mean), axis=-1, keepdims=True)
        hn = (h - mean) * lax.rsqrt(var + LN_EPS)
        o_ref[...] = (hn * g_ref[...] + b_ref[...]).astype(o_ref.dtype)


def sage_combine(agg2, xd2, wl_all, wr_sum, b_sum, gamma, beta, *, tile_m,
                 is_output_layer, out_dtype, vmem_cap):
    n_edge, nt_pad, f_in = agg2.shape
    f_out = wl_all.shape[-1]
    grid = (nt_pad // tile_m,)
    out_bytes = jnp.dtype(out_dtype).itemsize

    block_bytes = (2 * n_edge * tile_m * f_in * 2 + 2 * tile_m * f_in * 2
                   + 2 * (n_edge + 1) * f_in * f_out * 2
                   + 2 * tile_m * f_out * out_bytes
                   + 2 * tile_m * f_out * 4)
    flops = int(2 * nt_pad * f_in * f_out * (n_edge + 1))
    bytes_accessed = int(agg2.size * 2 + xd2.size * 2 + wl_all.size * 2
                         + wr_sum.size * 2 + nt_pad * f_out * out_bytes)
    transcendentals = 0 if is_output_layer else int(nt_pad)

    kernel = functools.partial(_sage_combine_kernel, n_edge=n_edge,
                               is_output_layer=is_output_layer)
    return pl.pallas_call(
        kernel,
        out_shape=jax.ShapeDtypeStruct((nt_pad, f_out), out_dtype),
        grid_spec=pltpu.PrefetchScalarGridSpec(
            num_scalar_prefetch=0,
            grid=grid,
            in_specs=[
                pl.BlockSpec((n_edge, tile_m, f_in), lambda i: (0, i, 0)),
                pl.BlockSpec((tile_m, f_in), lambda i: (i, 0)),
                pl.BlockSpec((n_edge, f_in, f_out), lambda i: (0, 0, 0)),
                pl.BlockSpec((f_in, f_out), lambda i: (0, 0)),
                pl.BlockSpec((1, f_out), lambda i: (0, 0)),
                pl.BlockSpec((1, f_out), lambda i: (0, 0)),
                pl.BlockSpec((1, f_out), lambda i: (0, 0)),
            ],
            out_specs=pl.BlockSpec((tile_m, f_out), lambda i: (i, 0)),
        ),
        compiler_params=pltpu.CompilerParams(
            dimension_semantics=("parallel",),
            vmem_limit_bytes=_vmem_limit_bytes(block_bytes, vmem_cap)),
        cost_estimate=pl.CostEstimate(flops=flops, transcendentals=transcendentals,
                                      bytes_accessed=bytes_accessed),
    )(agg2, xd2, wl_all, wr_sum, b_sum, gamma, beta)


# ---------------------------------------------------------------------------
# Tile-size heuristics (generation-aware VMEM budget).
# ---------------------------------------------------------------------------
def _k1_block_bytes(tile_d, tile_s, tf):
    return (2 * tile_d * tile_s * 2 + 2 * tile_s * tf * 2
            + 2 * tile_d * tf * 2 + tile_d * tf * 4)


def _choose_k1_tiles(n_dst, max_ns, tf, budget, max_tile_s=None):
    nd8 = _round_up(n_dst, 8)
    d_cands = {8, 16, 32, 64, 128, 256, 512, 1024}
    if nd8 <= 1024:
        d_cands.add(nd8)
    d_allow = max(nd8, int(1.25 * nd8))
    d_cands = sorted((c for c in d_cands if _round_up(n_dst, c) <= d_allow),
                     reverse=True)

    ns128 = _round_up(max_ns, 128)
    s_cands = {128, 256, 512, 1024, 2048}
    if ns128 <= 2048:
        s_cands.add(ns128)
    if max_tile_s is not None:
        s_cands = {c for c in s_cands if c <= max_tile_s} or {128}
    s_allow = max(ns128, int(1.25 * ns128))
    s_cands = sorted((c for c in s_cands if _round_up(max_ns, c) <= s_allow),
                     reverse=True)
    if not s_cands:
        s_cands = [128]

    for td in d_cands:            # prefer large dst tiles (MXU M, fewer xs re-reads)
        for ts in s_cands:        # then the largest src chunk that fits the VMEM budget
            if _k1_block_bytes(td, ts, tf) <= budget:
                return td, ts
    return d_cands[-1], s_cands[-1]


# ---------------------------------------------------------------------------
# Glue (plain JAX): dense mean-normalized adjacency, padding, pre-summed weights.
# NOTE: everything graph-dependent here can be precomputed once per static graph
# and reused across layers / forward calls.
# ---------------------------------------------------------------------------
def build_mean_adj(edge_index, n_src, n_dst):
    src, dst = edge_index
    adj = jnp.zeros((n_dst, n_src), jnp.float32).at[dst, src].add(1.0)
    deg = adj.sum(axis=1, keepdims=True)
    return adj / jnp.maximum(deg, 1.0)  # 1/deg kept in f32 before the bf16 cast


def hetero_forecast_sage_conv(x_dict, edge_index_dict, params, target_node_type,
                              is_output_layer=False, out_dtype=jnp.bfloat16,
                              max_tile_s=None):
    x_dst = x_dict[target_node_type]
    n_dst, t, f_in = x_dst.shape
    edge_types = list(edge_index_dict.keys())
    n_edge = len(edge_types)
    f_out = params[edge_types[0]]["w_l"].shape[-1]
    tf = t * f_in

    vmem_cap = _tpu_vmem_capacity_bytes()
    tile_budget = int(0.4 * vmem_cap)

    max_ns = max(x_dict[e[0]].shape[0] for e in edge_types)
    tile_d, tile_s = _choose_k1_tiles(n_dst, max_ns, tf, tile_budget, max_tile_s)
    n_dst_pad = _round_up(n_dst, tile_d)
    n_src_pad = _round_up(max_ns, tile_s)

    # --- per-edge inputs (padded, bf16 MXU operands) + pre-summed self-term weights ---
    adj_list, xs_list, wl_list, nt_list = [], [], [], []
    wr_sum = jnp.zeros((f_in, f_out), jnp.float32)
    b_sum = jnp.zeros((f_out,), jnp.float32)
    for e in edge_types:
        src_type, _, dst_type = e
        assert dst_type == target_node_type
        x_src = x_dict[src_type]
        n_src = x_src.shape[0]
        adj = build_mean_adj(edge_index_dict[e], n_src, n_dst)
        adj_p = jnp.zeros((n_dst_pad, n_src_pad), jnp.float32).at[:n_dst, :n_src].set(adj)
        adj_list.append(adj_p.astype(jnp.bfloat16))
        xs_p = jnp.zeros((n_src_pad, tf), jnp.float32).at[:n_src].set(
            x_src.reshape(n_src, tf))
        xs_list.append(xs_p.astype(jnp.bfloat16))
        wl_list.append(params[e]["w_l"].astype(jnp.bfloat16))
        nt_list.append(_cdiv(n_src, tile_s))
        wr_sum = wr_sum + params[e]["w_r"]
        b_sum = b_sum + params[e]["b_l"]

    adj_all = jnp.stack(adj_list)                      # [E, n_dst_pad, n_src_pad] bf16
    xs_all = jnp.stack(xs_list)                        # [E, n_src_pad, t*f_in]    bf16
    wl_all = jnp.stack(wl_list)                        # [E, f_in, f_out]          bf16
    n_src_tiles = jnp.asarray(nt_list, jnp.int32)      # [E]

    # Kernel 1: per-edge mean aggregation (bf16 intermediate, padded src tiles skipped).
    agg_all = aggregate_all(n_src_tiles, adj_all, xs_all,
                            tile_d=tile_d, tile_s=tile_s, vmem_cap=vmem_cap)
    nt_pad = n_dst_pad * t
    # free row-major reshape: [E, n_dst_pad, t*f_in] -> [E, n_dst_pad*t, f_in]
    agg2 = agg_all.reshape(n_edge, nt_pad, f_in)

    xd_p = jnp.zeros((n_dst_pad, t, f_in), jnp.float32).at[:n_dst].set(x_dst)
    xd2 = xd_p.reshape(nt_pad, f_in).astype(jnp.bfloat16)

    if (not is_output_layer) and ("norm" in params):
        gamma = params["norm"]["weight"].astype(jnp.float32)[None, :]
        beta = params["norm"]["bias"].astype(jnp.float32)[None, :]
    else:
        gamma = jnp.ones((1, f_out), jnp.float32)
        beta = jnp.zeros((1, f_out), jnp.float32)

    # kernel-2 row tile: (divisor of tile_d) * t rows, shrunk only if it busts VMEM.
    out_bytes = jnp.dtype(out_dtype).itemsize

    def _k2_bytes(tm):
        return (2 * n_edge * tm * f_in * 2 + 2 * tm * f_in * 2
                + 2 * (n_edge + 1) * f_in * f_out * 2
                + 2 * tm * f_out * out_bytes + 2 * tm * f_out * 4)

    d2 = tile_d
    while ((d2 * t > 8192 or _k2_bytes(d2 * t) > tile_budget)
           and d2 % 2 == 0 and ((d2 // 2) * t) % 8 == 0 and d2 > 8):
        d2 //= 2
    tile_m = d2 * t

    # Kernel 2: fused linears + edge-type sum + relu + LayerNorm, bf16 output.
    out2 = sage_combine(agg2, xd2, wl_all, wr_sum.astype(jnp.bfloat16),
                        b_sum[None, :], gamma, beta, tile_m=tile_m,
                        is_output_layer=is_output_layer, out_dtype=out_dtype,
                        vmem_cap=vmem_cap)

    out = out2.reshape(n_dst_pad, t, f_out)[:n_dst]   # keep the slice: padded rows = LN(0)
    return {target_node_type: out}


# ---------------------------------------------------------------------------
# References.
# ---------------------------------------------------------------------------
def reference_forward(x_dict, edge_index_dict, params, target_node_type,
                      is_output_layer=False):
    """Faithful f32 implementation of the module semantics (eval mode)."""
    x_dst = x_dict[target_node_type]
    n_dst = x_dst.shape[0]
    out = None
    for e, ei in edge_index_dict.items():
        x_src = x_dict[e[0]]
        adj = build_mean_adj(ei, x_src.shape[0], n_dst)
        agg = jnp.einsum("ds,stf->dtf", adj, x_src)
        o = agg @ params[e]["w_l"] + x_dst @ params[e]["w_r"] + params[e]["b_l"]
        out = o if out is None else out + o
    h = jax.nn.relu(out)
    if is_output_layer:
        return {target_node_type: h}
    mean = h.mean(-1, keepdims=True)
    var = ((h - mean) ** 2).mean(-1, keepdims=True)
    hn = (h - mean) * lax.rsqrt(var + LN_EPS)
    return {target_node_type: hn * params["norm"]["weight"] + params["norm"]["bias"]}


def reference_forward_matched(x_dict, edge_index_dict, params, target_node_type,
                              is_output_layer=False):
    """Mirrors the kernel's bf16 quantization points exactly (f32 accumulation)."""
    bf16 = jnp.bfloat16
    x_dst = x_dict[target_node_type]
    n_dst, t, f_in = x_dst.shape
    acc, wr_sum, b_sum = None, None, None
    for e, ei in edge_index_dict.items():
        x_src = x_dict[e[0]]
        n_src = x_src.shape[0]
        adj = build_mean_adj(ei, n_src, n_dst).astype(bf16)
        xs2 = x_src.reshape(n_src, t * f_in).astype(bf16)
        agg = jnp.dot(adj, xs2, preferred_element_type=jnp.float32).astype(bf16)
        agg = agg.reshape(n_dst * t, f_in)
        contrib = jnp.dot(agg, params[e]["w_l"].astype(bf16),
                          preferred_element_type=jnp.float32)
        acc = contrib if acc is None else acc + contrib
        wr_sum = params[e]["w_r"] if wr_sum is None else wr_sum + params[e]["w_r"]
        b_sum = params[e]["b_l"] if b_sum is None else b_sum + params[e]["b_l"]
    xd2 = x_dst.reshape(n_dst * t, f_in).astype(bf16)
    acc = acc + jnp.dot(xd2, wr_sum.astype(bf16),
                        preferred_element_type=jnp.float32) + b_sum[None, :]
    h = jax.nn.relu(acc)
    if not is_output_layer:
        mean = h.mean(-1, keepdims=True)
        var = ((h - mean) ** 2).mean(-1, keepdims=True)
        h = (h - mean) * lax.rsqrt(var + LN_EPS)
        h = h * params["norm"]["weight"][None, :] + params["norm"]["bias"][None, :]
    h = h.astype(bf16)  # kernel emits bf16
    return {target_node_type: h.reshape(n_dst, t, -1)}


if __name__ == "__main__":
    # Small shapes; N_O chosen so the two edge types have a different number of src
    # tiles (exercises the per-edge padded-src-tile skip path with max_tile_s=128).
    N_T, N_O, T, F_IN, F_OUT = 48, 300, 8, 64, 128
    target = "target"
    edge_types = [("target", "self", "target"), ("other", "to", "target")]

    key = jax.random.PRNGKey(0)
    k_xt, k_xo, k_g, k_b, *wkeys = jax.random.split(key, 4 + 3 * len(edge_types))

    x_dict = {
        "target": jax.random.normal(k_xt, (N_T, T, F_IN), jnp.float32),
        "other": jax.random.normal(k_xo, (N_O, T, F_IN), jnp.float32),
    }
    edge_index_dict = {
        ("target", "self", "target"): (
            jnp.arange(N_T, dtype=jnp.int32),
            (jnp.arange(N_T, dtype=jnp.int32) + 1) % N_T,
        ),
        ("other", "to", "target"): (
            jnp.arange(N_O, dtype=jnp.int32),
            jnp.arange(N_O, dtype=jnp.int32) % N_T,
        ),
    }

    # Synthetic parameters (SAGEConv3D lin_l with bias, lin_r no bias; LayerNorm mode='node').
    params = {}
    for i, e in enumerate(edge_types):
        kw_l, kw_r, kb = wkeys[3 * i: 3 * i + 3]
        params[e] = {
            "w_l": 0.1 * jax.random.normal(kw_l, (F_IN, F_OUT), jnp.float32),
            "w_r": 0.1 * jax.random.normal(kw_r, (F_IN, F_OUT), jnp.float32),
            "b_l": 0.1 * jax.random.normal(kb, (F_OUT,), jnp.float32),
        }
    params["norm"] = {
        "weight": 1.0 + 0.1 * jax.random.normal(k_g, (F_OUT,), jnp.float32),
        "bias": 0.05 * jax.random.normal(k_b, (F_OUT,), jnp.float32),
    }

    for is_out in (False, True):
        out = hetero_forecast_sage_conv(x_dict, edge_index_dict, params, target,
                                        is_output_layer=is_out, max_tile_s=128)
        out_t = jax.block_until_ready(out[target])
        assert out_t.shape == (N_T, T, F_OUT)
        out_f32 = np.asarray(out_t.astype(jnp.float32))

        # (1) exact-plumbing check against a reference with identical bf16 cast points
        ref_m = reference_forward_matched(x_dict, edge_index_dict, params, target,
                                          is_output_layer=is_out)[target]
        np.testing.assert_allclose(out_f32, np.asarray(ref_m.astype(jnp.float32)),
                                   atol=3e-2, rtol=3e-2)

        # (2) bounded-quantization sanity check against the faithful f32 reference
        ref_f = reference_forward(x_dict, edge_index_dict, params, target,
                                  is_output_layer=is_out)[target]
        np.testing.assert_allclose(out_f32, np.asarray(ref_f),
                                   atol=1e-1, rtol=1e-1)

    print("KERNEL_OK")
</pallas_src>

<mosaic_0001>
module attributes {stable_mosaic.version = 11 : i64} {
  func.func @_aggregate_kernel(%arg0: i32, %arg1: i32, %arg2: i32, %arg3: memref<2xi32, #tpu.memory_space<smem>>, %arg4: memref<1x48x128xbf16, #tpu.memory_space<vmem>>, %arg5: memref<1x128x512xbf16, #tpu.memory_space<vmem>>, %arg6: memref<1x48x512xbf16, #tpu.memory_space<vmem>>, %arg7: memref<48x512xf32, #tpu.memory_space<vmem>>) attributes {dimension_semantics = [#tpu.dimension_semantics<parallel>, #tpu.dimension_semantics<arbitrary>, #tpu.dimension_semantics<arbitrary>], iteration_bounds = array<i64: 1, 2, 3>, scalar_prefetch = 1 : i64, scratch_operands = 1 : i64, tpu.core_type = #tpu.core_type<tc>, window_params = [{transform_indices = @transform_0, window_bounds = array<i64: 1, 48, 128>}, {transform_indices = @transform_1, window_bounds = array<i64: 1, 128, 512>}, {transform_indices = @transform_2, window_bounds = array<i64: 1, 48, 512>}]} {
    %c0_i32 = arith.constant 0 : i32
    %0 = arith.cmpi eq, %arg2, %c0_i32 : i32
    %1 = arith.extui %0 : i1 to i32
    %c0_i32_0 = arith.constant 0 : i32
    %2 = arith.cmpi ne, %1, %c0_i32_0 : i32
    scf.if %2 {
      %cst = arith.constant 0.000000e+00 : f32
      %11 = vector.broadcast %cst : f32 to vector<48x512xf32>
      %c0 = arith.constant 0 : index
      %c0_3 = arith.constant 0 : index
      %12 = vector.load %arg7[%c0, %c0_3] : memref<48x512xf32, #tpu.memory_space<vmem>>, vector<48x512xf32>
      tpu.vector_store %arg7[%c0, %c0_3], %11 {strides = array<i32>} : memref<48x512xf32, #tpu.memory_space<vmem>>, vector<48x512xf32>,
    } else {
    }
    %3 = arith.index_cast %arg1 : i32 to index
    %4 = memref.load %arg3[%3] : memref<2xi32, #tpu.memory_space<smem>>
    %5 = arith.cmpi slt, %arg2, %4 : i32
    %6 = arith.extui %5 : i1 to i32
    %c0_i32_1 = arith.constant 0 : i32
    %7 = arith.cmpi ne, %6, %c0_i32_1 : i32
    scf.if %7 {
      %c0 = arith.constant 0 : index
      %c0_3 = arith.constant 0 : index
      %11 = vector.load %arg7[%c0, %c0_3] : memref<48x512xf32, #tpu.memory_space<vmem>>, vector<48x512xf32>
      %c0_4 = arith.constant 0 : index
      %c0_5 = arith.constant 0 : index
      %c0_6 = arith.constant 0 : index
      %12 = vector.load %arg4[%c0_4, %c0_5, %c0_6] : memref<1x48x128xbf16, #tpu.memory_space<vmem>>, vector<1x48x128xbf16>
      %13 = vector.shape_cast %12 : vector<1x48x128xbf16> to vector<48x128xbf16>
      %c0_7 = arith.constant 0 : index
      %c0_8 = arith.constant 0 : index
      %c0_9 = arith.constant 0 : index
      %14 = vector.load %arg5[%c0_7, %c0_8, %c0_9] : memref<1x128x512xbf16, #tpu.memory_space<vmem>>, vector<1x128x512xbf16>
      %15 = vector.shape_cast %14 : vector<1x128x512xbf16> to vector<128x512xbf16>
      %cst = arith.constant dense<0.000000e+00> : vector<48x512xf32>
      %16 = tpu.matmul %13, %15, %cst {dimension_numbers = #tpu.dot_dimension_numbers<[1], [0], [0], [1], [0, 0, 1, 1], [], []>} : vector<48x128xbf16>, vector<128x512xbf16>, vector<48x512xf32> -> vector<48x512xf32>
      %17 = arith.addf %11, %16 : vector<48x512xf32>
      %c0_10 = arith.constant 0 : index
      %c0_11 = arith.constant 0 : index
      %18 = vector.load %arg7[%c0_10, %c0_11] : memref<48x512xf32, #tpu.memory_space<vmem>>, vector<48x512xf32>
      tpu.vector_store %arg7[%c0_10, %c0_11], %17 {strides = array<i32>} : memref<48x512xf32, #tpu.memory_space<vmem>>, vector<48x512xf32>,
    } else {
    }
    %c2_i32 = arith.constant 2 : i32
    %8 = arith.cmpi eq, %arg2, %c2_i32 : i32
    %9 = arith.extui %8 : i1 to i32
    %c0_i32_2 = arith.constant 0 : i32
    %10 = arith.cmpi ne, %9, %c0_i32_2 : i32
    scf.if %10 {
      %c0 = arith.constant 0 : index
      %c0_3 = arith.constant 0 : index
      %11 = vector.load %arg7[%c0, %c0_3] : memref<48x512xf32, #tpu.memory_space<vmem>>, vector<48x512xf32>
      %12 = arith.truncf %11 : vector<48x512xf32> to vector<48x512xbf16>
      %c0_4 = arith.constant 0 : index
      %c0_5 = arith.constant 0 : index
      %c0_6 = arith.constant 0 : index
      %13 = vector.load %arg6[%c0_4, %c0_5, %c0_6] : memref<1x48x512xbf16, #tpu.memory_space<vmem>>, vector<1x48x512xbf16>
      %14 = vector.shape_cast %13 : vector<1x48x512xbf16> to vector<48x512xbf16>
      %15 = vector.shape_cast %12 : vector<48x512xbf16> to vector<1x48x512xbf16>
      tpu.vector_store %arg6[%c0_4, %c0_5, %c0_6], %15 {strides = array<i32>} : memref<1x48x512xbf16, #tpu.memory_space<vmem>>, vector<1x48x512xbf16>,
    } else {
    }
    return
  }
  func.func @transform_0(%arg0: i32, %arg1: i32, %arg2: i32, %arg3: memref<2xi32, #tpu.memory_space<smem>>) -> (i32, i32, i32) {
    %0 = arith.index_cast %arg1 : i32 to index
    %1 = memref.load %arg3[%0] : memref<2xi32, #tpu.memory_space<smem>>
    %c1_i32 = arith.constant 1 : i32
    %2 = arith.subi %1, %c1_i32 : i32
    %3 = arith.minsi %arg2, %2 : i32
    %c0_i32 = arith.constant 0 : i32
    return %arg1, %arg0, %3 : i32, i32, i32
  }
  func.func @transform_1(%arg0: i32, %arg1: i32, %arg2: i32, %arg3: memref<2xi32, #tpu.memory_space<smem>>) -> (i32, i32, i32) {
    %0 = arith.index_cast %arg1 : i32 to index
    %1 = memref.load %arg3[%0] : memref<2xi32, #tpu.memory_space<smem>>
    %c1_i32 = arith.constant 1 : i32
    %2 = arith.subi %1, %c1_i32 : i32
    %3 = arith.minsi %arg2, %2 : i32
    %c0_i32 = arith.constant 0 : i32
    %c0_i32_0 = arith.constant 0 : i32
    return %arg1, %3, %c0_i32 : i32, i32, i32
  }
  func.func @transform_2(%arg0: i32, %arg1: i32, %arg2: i32, %arg3: memref<2xi32, #tpu.memory_space<smem>>) -> (i32, i32, i32) {
    %c0_i32 = arith.constant 0 : i32
    %c0_i32_0 = arith.constant 0 : i32
    return %arg1, %arg0, %c0_i32 : i32, i32, i32
  }
}

</mosaic_0001>

<llo_original>
// kernel: tpu_custom_call.1
$region0: #{tpu_custom_call.1}
  #allocation0 [shape = 'u32[]', space=smem, size = 0x4, offset = 0x4, fixed_abs, tag = 'smem constant byte address 0x4 - core index']
  #allocation1 [shape = 'u32[144,128]{1,0:T(1,128)}', space=vmem, size = 0x12000, scoped, tag = 'internal scratch']
  #allocation2 [shape = 'f32[48,512]{1,0:T(8,128)}', space=vmem, size = 0x18000, scoped, tag = 'scratch operand']
  #allocation3 [shape = 's32[1]{0}', space=sflag, size = 0x4, scoped, tag = 'scoped memory for tpu_custom_call.1']
  #allocation4 [shape = 'u8[512]{0}', space=smem, size = 0x200, scoped, tag = 'prefetched SMEM operand 0']
  %s0 = inlined_call_operand.hbm [shape: s32[2], index: 0, kind: input, shape index: {}]
  %s1 = inlined_call_operand.hbm [shape: bf16[2,48,384], index: 1, kind: input, shape index: {}]
  %s2 = inlined_call_operand.hbm [shape: bf16[2,384,512], index: 2, kind: input, shape index: {}]
  %s3 = inlined_call_operand.hbm [shape: bf16[2,48,512], index: 3, kind: output, shape index: {}]
  %s4 = sld [smem:[#allocation0]]
  $region61: #{tpu_custom_call.1} parent=0
    _
  %s6 = ssub.s32 1, %s4
  %s7 = scalar_select 0, %s6, %s4
  %9 = dma.hbm_to_smem %s0, 16, [#allocation4], [#allocation3]
  %10 = dma.done [#allocation3], 16
  %11 = sfence
  $region1: #{tpu_custom_call.1} parent=0
    #allocation5 [shape = 'u8[24576]{0}', space=vmem, size = 0x6000, scoped, tag = 'input window, operand 1']
    #allocation6 [shape = 's32[2]{0}', space=sflag, size = 0x8, scoped, tag = 'scoped memory for tpu_custom_call.1']
    #allocation7 [shape = 's32[2]{0}', space=sflag, size = 0x8, scoped, tag = 'scoped memory for tpu_custom_call.1']
    #allocation8 [shape = 'u8[262144]{0}', space=vmem, size = 0x40000, scoped, tag = 'input window, operand 2']
    #allocation9 [shape = 's32[2]{0}', space=sflag, size = 0x8, scoped, tag = 'scoped memory for tpu_custom_call.1']
    #allocation10 [shape = 'u8[98304]{0}', space=vmem, size = 0x18000, scoped, tag = 'output window, operand 0']
    %12 = vsyncpa [#allocation6], 0
    %s13 = scalar_lea.sflag [#allocation6], 1
    %14 = vsyncpa %s13, 0
    %15 = vsyncpa [#allocation9], 0
    %s16 = scalar_lea.sflag [#allocation9], 1
    %17 = vsyncpa %s16, 0
    %18 = vsyncpa [#allocation7], 0
    %s19 = scalar_lea.sflag [#allocation7], 1
    %20 = vsyncpa %s19, 0
    loop: start=0, step=1, limit=8
    $region2: #{tpu_custom_call.1} parent=1 // loop_pre_header
      _
    $region3: #{tpu_custom_call.1} parent=1 // loop_header
      %s22 = sphi 0, %s26
      %p23 = scmp.ge.s32.totalorder %s22, 8
      %s29 = sphi 0, %s48
      %s30 = sphi 0, %s44
      %s31 = sphi 0, %s40
      %s32 = sphi 0, %s29
      %s33 = sphi 0, %s30
      %s34 = sphi 0, %s31
      %s35 = sphi 0, %s32
      %s36 = sphi 0, %s33
      %s37 = sphi 0, %s34
      %s63 = sphi 0, %s65
      %s66 = sphi 0, %s63
      %s67 = sphi 0, %s66
      %s83 = sphi 0, %s67
      %s99 = sphi 0, %s101
      %s102 = sphi 0, %s99
      %s103 = sphi 0, %s102
      %s119 = sphi 0, %s103
      %s127 = sphi 0, %s129
      %s130 = sphi 0, %s127
      %s131 = sphi 0, %s130
      %s147 = sphi 0, %s131
    $region4: #{tpu_custom_call.1} parent=1 // loop_header_branch
      %25 = sbr.rel (%p23) target = $region8
    $region5: #{tpu_custom_call.1} parent=1 // loop_body
      %s27 = ssub.s32 %s22, 1
      %s28 = ssub.s32 %s22, 2
      %s38 = sadd.s32 1, %s31
      %p39 = scmp.ge.s32.totalorder %s38, 3
      %s40 = scalar_select %p39, 0, %s38
      %s41 = sadd.s32 1, %s30
      %s42 = scalar_select %p39, %s41, %s30
      %p43 = scmp.ge.s32.totalorder %s42, 2
      %s44 = scalar_select %p43, 0, %s42
      %s45 = sadd.s32 1, %s29
      %s46 = scalar_select %p43, %s45, %s29
      %p47 = scmp.ge.s32.totalorder %s46, 1
      %s48 = scalar_select %p47, 0, %s46
      %s49 = sld [smem:[#allocation4 + %s30]]
      %s50 = ssub.s32 %s49, 1
      %p51 = scmp.lt.s32.totalorder %s31, %s50
      %s52 = scalar_select %p51, %s31, %s50
      %s53 = sld [smem:[#allocation4 + %s44]]
      %s54 = ssub.s32 %s53, 1
      %p55 = scmp.lt.s32.totalorder %s40, %s54
      %s56 = scalar_select %p55, %s40, %s54
      %s57 = ssub.s32 %s30, %s44
      %s58 = ssub.s32 %s29, %s48
      %s59 = sor.u32 %s57, %s58
      %s60 = ssub.s32 %s52, %s56
      %s61 = sor.u32 %s59, %s60
      %p62 = scmp.eq.s32.totalorder %s61, 0
      %s64 = sadd.s32 %s63, 1
      %s65 = scalar_select %p62, %s63, %s64
      %p68 = pneg %p62
      %p69 = scmp.eq.s32.totalorder %s22, 5
      %p70 = por %p68, %p69
      %p71 = scmp.ne.s32.totalorder %s63, %s66
      %p72 = scmp.eq.s32.totalorder %s22, 0
      %p73 = por %p71, %p72
      %p74 = scmp.ne.s32.totalorder %s63, %s66
      %p75 = scmp.eq.s32.totalorder %s27, 5
      %p76 = por %p74, %p75
      %p77 = scmp.ne.s32.totalorder %s66, %s67
      %p78 = scmp.eq.s32.totalorder %s27, 0
      %p79 = por %p77, %p78
      %p80 = scmp.ne.s32.totalorder %s66, %s67
      %p81 = scmp.eq.s32.totalorder %s28, 5
      %p82 = por %p80, %p81
      %p84 = scmp.ne.s32.totalorder %s67, %s83
      %p85 = scmp.eq.s32.totalorder %s28, 0
      %p86 = por %p84, %p85
      %s87 = sld [smem:[#allocation4 + %s30]]
      %s88 = ssub.s32 %s87, 1
      %p89 = scmp.lt.s32.totalorder %s31, %s88
      %s90 = scalar_select %p89, %s31, %s88
      %s91 = sld [smem:[#allocation4 + %s44]]
      %s92 = ssub.s32 %s91, 1
      %p93 = scmp.lt.s32.totalorder %s40, %s92
      %s94 = scalar_select %p93, %s40, %s92
      %s95 = ssub.s32 %s30, %s44
      %s96 = ssub.s32 %s90, %s94
      %s97 = sor.u32 %s95, %s96
      %p98 = scmp.eq.s32.totalorder %s97, 0
      %s100 = sadd.s32 %s99, 1
      %s101 = scalar_select %p98, %s99, %s100
      %p104 = pneg %p98
      %p105 = scmp.eq.s32.totalorder %s22, 5
      %p106 = por %p104, %p105
      %p107 = scmp.ne.s32.totalorder %s99, %s102
      %p108 = scmp.eq.s32.totalorder %s22, 0
      %p109 = por %p107, %p108
      %p110 = scmp.ne.s32.totalorder %s99, %s102
      %p111 = scmp.eq.s32.totalorder %s27, 5
      %p112 = por %p110, %p111
      %p113 = scmp.ne.s32.totalorder %s102, %s103
      %p114 = scmp.eq.s32.totalorder %s27, 0
      %p115 = por %p113, %p114
      %p116 = scmp.ne.s32.totalorder %s102, %s103
      %p117 = scmp.eq.s32.totalorder %s28, 5
      %p118 = por %p116, %p117
      %p120 = scmp.ne.s32.totalorder %s103, %s119
      %p121 = scmp.eq.s32.totalorder %s28, 0
      %p122 = por %p120, %p121
      %s123 = ssub.s32 %s30, %s44
      %s124 = ssub.s32 %s29, %s48
      %s125 = sor.u32 %s123, %s124
      %p126 = scmp.eq.s32.totalorder %s125, 0
      %s128 = sadd.s32 %s127, 1
      %s129 = scalar_select %p126, %s127, %s128
      %p132 = pneg %p126
      %p133 = scmp.eq.s32.totalorder %s22, 5
      %p134 = por %p132, %p133
      %p135 = scmp.ne.s32.totalorder %s127, %s130
      %p136 = scmp.eq.s32.totalorder %s22, 0
      %p137 = por %p135, %p136
      %p138 = scmp.ne.s32.totalorder %s127, %s130
      %p139 = scmp.eq.s32.totalorder %s27, 5
      %p140 = por %p138, %p139
      %p141 = scmp.ne.s32.totalorder %s130, %s131
      %p142 = scmp.eq.s32.totalorder %s27, 0
      %p143 = por %p141, %p142
      %p144 = scmp.ne.s32.totalorder %s130, %s131
      %p145 = scmp.eq.s32.totalorder %s28, 5
      %p146 = por %p144, %p145
      %p148 = scmp.ne.s32.totalorder %s131, %s147
      %p149 = scmp.eq.s32.totalorder %s28, 0
      %p150 = por %p148, %p149
      %p151 = scmp.le.s32.totalorder 1, %s22
      %p152 = scmp.lt.s32.totalorder %s22, 7
      %p153 = pnand %p151, %p152
      %p154 = pneg %p153
      // Predicated region
      $region9: #{tpu_custom_call.1} parent=5 // pred_check
        _
      $region10: #{tpu_custom_call.1} parent=5 // pred_check_branch
        %156 = sbr.rel (%p153) target = $region12
      $region11: #{tpu_custom_call.1} parent=5 // pred_region
        %s157 = ssub.s32 %s22, 1
      $region12: #{tpu_custom_call.1} parent=5 // pred_fallthru
        _
      %p158 = scmp.lt.s32.totalorder %s22, 6
      // Predicated region
      $region13: #{tpu_custom_call.1} parent=5 // pred_check
        %p159 = pneg %p158
      $region14: #{tpu_custom_call.1} parent=5 // pred_check_branch
        %161 = sbr.rel (%p159) target = $region16
      $region15: #{tpu_custom_call.1} parent=5 // pred_region
        // Predicated region
        $region17: #{tpu_custom_call.1} parent=15 // pred_check
          %p162 = pneg %p73
        $region18: #{tpu_custom_call.1} parent=15 // pred_check_branch
          %164 = sbr.rel (%p162) target = $region20
        $region19: #{tpu_custom_call.1} parent=15 // pred_region
          %s165 = sand.u32 %s63, 1
          %s166 = scalar_lea.sflag [#allocation6], %s165
          %s167 = sand.u32 %s63, 1
          %s168 = smul.addr %s167, 24
          %s169 = scalar_lea.vmem [#allocation5], %s168
          %s170 = sld [smem:[#allocation4 + %s30]]
          %s171 = ssub.s32 %s170, 1
          %p172 = scmp.lt.s32.totalorder %s31, %s171
          %s173 = scalar_select %p172, %s31, %s171
          %s174 = smul.u32 6, %s29
          %s176 = ssub.s32 384, 384
          %177 = vsyncadd %s166, %s176
          %s178 = smul.addr %s174, 3
          %s179 = sadd.s32 %s173, %s178
          %s180 = smul.addr %s30, 18
          %s181 = sadd.s32 %s179, %s180
          %s182 = smul.addr %s181, 64
          %s183 = scalar_lea.hbm %s1, %s182
          %s184 = sshll.u32 %s169, 4
          %s185 = int_to_ptr.vmem [resolvable:$true] %s184
          %190 = dma.hbm_to_vmem [thread:$0]  %s183, 384, %s185, %s166, 192, 64, 4
        $region20: #{tpu_custom_call.1} parent=15 // pred_fallthru
          _
        // Predicated region
        $region21: #{tpu_custom_call.1} parent=15 // pred_check
          %p191 = pneg %p109
        $region22: #{tpu_custom_call.1} parent=15 // pred_check_branch
          %193 = sbr.rel (%p191) target = $region24
        $region23: #{tpu_custom_call.1} parent=15 // pred_region
          %s194 = sand.u32 %s99, 1
          %s195 = scalar_lea.sflag [#allocation9], %s194
          %s196 = sand.u32 %s99, 1
          %s197 = smul.addr %s196, 256
          %s198 = scalar_lea.vmem [#allocation8], %s197
          %s199 = sld [smem:[#allocation4 + %s30]]
          %s200 = ssub.s32 %s199, 1
          %p201 = scmp.lt.s32.totalorder %s31, %s200
          %s202 = scalar_select %p201, %s31, %s200
          %s203 = smul.u32 16, %s202
          %s205 = ssub.s32 4096, 4096
          %206 = vsyncadd %s195, %s205
          %s207 = smul.addr %s203, 4
          %s208 = smul.addr %s30, 192
          %s209 = sadd.s32 %s207, %s208
          %s210 = smul.addr %s209, 64
          %s211 = scalar_lea.hbm %s2, %s210
          %s212 = sshll.u32 %s198, 4
          %s213 = int_to_ptr.vmem [resolvable:$true] %s212
          %218 = dma.hbm_to_vmem [thread:$0]  %s211, 4096, %s213, %s195, 256, 256, 16
        $region24: #{tpu_custom_call.1} parent=15 // pred_fallthru
          _
      $region16: #{tpu_custom_call.1} parent=5 // pred_fallthru
        _
      %p219 = scmp.le.s32.totalorder 1, %s22
      %p220 = scmp.lt.s32.totalorder %s22, 7
      %p221 = pnand %p219, %p220
      %p222 = pneg %p221
      // Predicated region
      $region25: #{tpu_custom_call.1} parent=5 // pred_check
        _
      $region26: #{tpu_custom_call.1} parent=5 // pred_check_branch
        %224 = sbr.rel (%p221) target = $region28
      $region27: #{tpu_custom_call.1} parent=5 // pred_region
        %s225 = ssub.s32 %s22, 1
        %s226 = sand.u32 %s66, 1
        %s227 = scalar_lea.sflag [#allocation6], %s226
        %s228 = sand.u32 %s66, 1
        %s229 = smul.addr %s228, 24
        %s230 = scalar_lea.vmem [#allocation5], %s229
        // Predicated region
        $region29: #{tpu_custom_call.1} parent=27 // pred_check
          %p231 = pneg %p79
        $region30: #{tpu_custom_call.1} parent=27 // pred_check_branch
          %233 = sbr.rel (%p231) target = $region32
        $region31: #{tpu_custom_call.1} parent=27 // pred_region
          %234 = dma.done %s227, 384
        $region32: #{tpu_custom_call.1} parent=27 // pred_fallthru
          _
        %s235 = sand.u32 %s102, 1
        %s236 = scalar_lea.sflag [#allocation9], %s235
        %s237 = sand.u32 %s102, 1
        %s238 = smul.addr %s237, 256
        %s239 = scalar_lea.vmem [#allocation8], %s238
        // Predicated region
        $region33: #{tpu_custom_call.1} parent=27 // pred_check
          %p240 = pneg %p115
        $region34: #{tpu_custom_call.1} parent=27 // pred_check_branch
          %242 = sbr.rel (%p240) target = $region36
        $region35: #{tpu_custom_call.1} parent=27 // pred_region
          %243 = dma.done %s236, 4096
        $region36: #{tpu_custom_call.1} parent=27 // pred_fallthru
          _
        %s244 = sand.u32 %s66, 1
        %s245 = scalar_lea.sflag [#allocation6], %s244
        %s246 = sand.u32 %s66, 1
        %s247 = smul.addr %s246, 24
        %s248 = scalar_lea.vmem [#allocation5], %s247
        %p249 = pneg %p79
        %p250 = pneg %p76
        %s251 = sand.u32 %s102, 1
        %s252 = scalar_lea.sflag [#allocation9], %s251
        %s253 = sand.u32 %s102, 1
        %s254 = smul.addr %s253, 256
        %s255 = scalar_lea.vmem [#allocation8], %s254
        %p256 = pneg %p115
        %p257 = pneg %p112
        %p258 = pneg %p143
        %p259 = pneg %p140
        %s260 = sand.u32 %s130, 1
        %s261 = scalar_lea.sflag [#allocation7], %s260
        %s262 = sand.u32 %s130, 1
        %s263 = smul.addr %s262, 96
        %s264 = scalar_lea.vmem [#allocation10], %s263
        %s265 = sld [smem:[#allocation4 + %s33]]
        %s266 = ssub.s32 %s265, 1
        %p267 = scmp.lt.s32.totalorder %s34, %s266
        %s268 = scalar_select %p267, %s34, %s266
        %s269 = smul.u32 6, %s32
        %s270 = sld [smem:[#allocation4 + %s33]]
        %s271 = ssub.s32 %s270, 1
        %p272 = scmp.lt.s32.totalorder %s34, %s271
        %s273 = scalar_select %p272, %s34, %s271
        %s274 = smul.u32 16, %s273
        %s275 = smul.u32 6, %s32
        %p277 = scmp.eq.s32.totalorder %s34, 0
        // Predicated region
        $region37: #{tpu_custom_call.1} parent=27 // pred_check
          %p278 = pneg %p277
        $region38: #{tpu_custom_call.1} parent=27 // pred_check_branch
          %280 = sbr.rel (%p278) target = $region40
        $region39: #{tpu_custom_call.1} parent=27 // pred_region
          %281 = vst [vmem:[#allocation2] sm:$0xff] 0.0
          %282 = vst [vmem:[#allocation2 + $0x8] sm:$0xff] 0.0
          %283 = vst [vmem:[#allocation2 + $0x10] sm:$0xff] 0.0
          %284 = vst [vmem:[#allocation2 + $0x18] sm:$0xff] 0.0
          %285 = vst [vmem:[#allocation2 + $0x20] sm:$0xff] 0.0
          %286 = vst [vmem:[#allocation2 + $0x28] sm:$0xff] 0.0
          %287 = vst [vmem:[#allocation2 + $0x30] sm:$0xff] 0.0
          %288 = vst [vmem:[#allocation2 + $0x38] sm:$0xff] 0.0
          %289 = vst [vmem:[#allocation2 + $0x40] sm:$0xff] 0.0
          %290 = vst [vmem:[#allocation2 + $0x48] sm:$0xff] 0.0
          %291 = vst [vmem:[#allocation2 + $0x50] sm:$0xff] 0.0
          %292 = vst [vmem:[#allocation2 + $0x58] sm:$0xff] 0.0
          %293 = vst [vmem:[#allocation2 + $0x60] sm:$0xff] 0.0
          %294 = vst [vmem:[#allocation2 + $0x68] sm:$0xff] 0.0
          %295 = vst [vmem:[#allocation2 + $0x70] sm:$0xff] 0.0
          %296 = vst [vmem:[#allocation2 + $0x78] sm:$0xff] 0.0
          %297 = vst [vmem:[#allocation2 + $0x80] sm:$0xff] 0.0
          %298 = vst [vmem:[#allocation2 + $0x88] sm:$0xff] 0.0
          %299 = vst [vmem:[#allocation2 + $0x90] sm:$0xff] 0.0
          %300 = vst [vmem:[#allocation2 + $0x98] sm:$0xff] 0.0
          %301 = vst [vmem:[#allocation2 + $0xa0] sm:$0xff] 0.0
          %302 = vst [vmem:[#allocation2 + $0xa8] sm:$0xff] 0.0
          %303 = vst [vmem:[#allocation2 + $0xb0] sm:$0xff] 0.0
          %304 = vst [vmem:[#allocation2 + $0xb8] sm:$0xff] 0.0
        $region40: #{tpu_custom_call.1} parent=27 // pred_fallthru
          _
        %s305 = sld [smem:[#allocation4 + %s33]]
        %p306 = scmp.lt.s32.totalorder %s34, %s305
        // Predicated region
        $region41: #{tpu_custom_call.1} parent=27 // pred_check
          %p307 = pneg %p306
        $region42: #{tpu_custom_call.1} parent=27 // pred_check_branch
          %309 = sbr.rel (%p307) target = $region44
        $region43: #{tpu_custom_call.1} parent=27 // pred_region
          %v310 = vld [vmem:[#allocation2] sm:$0xff]
          %v311 = vld [vmem:[#allocation2 + $0x8] sm:$0xff]
          %v312 = vld [vmem:[#allocation2 + $0x10] sm:$0xff]
          %v313 = vld [vmem:[#allocation2 + $0x18] sm:$0xff]
          %v314 = vld [vmem:[#allocation2 + $0x20] sm:$0xff]
          %v315 = vld [vmem:[#allocation2 + $0x28] sm:$0xff]
          %v316 = vld [vmem:[#allocation2 + $0x30] sm:$0xff]
          %v317 = vld [vmem:[#allocation2 + $0x38] sm:$0xff]
          %v318 = vld [vmem:[#allocation2 + $0x40] sm:$0xff]
          %v319 = vld [vmem:[#allocation2 + $0x48] sm:$0xff]
          %v320 = vld [vmem:[#allocation2 + $0x50] sm:$0xff]
          %v321 = vld [vmem:[#allocation2 + $0x58] sm:$0xff]
          %v322 = vld [vmem:[#allocation2 + $0x60] sm:$0xff]
          %v323 = vld [vmem:[#allocation2 + $0x68] sm:$0xff]
          %v324 = vld [vmem:[#allocation2 + $0x70] sm:$0xff]
          %v325 = vld [vmem:[#allocation2 + $0x78] sm:$0xff]
          %v326 = vld [vmem:[#allocation2 + $0x80] sm:$0xff]
          %v327 = vld [vmem:[#allocation2 + $0x88] sm:$0xff]
          %v328 = vld [vmem:[#allocation2 + $0x90] sm:$0xff]
          %v329 = vld [vmem:[#allocation2 + $0x98] sm:$0xff]
          %v330 = vld [vmem:[#allocation2 + $0xa0] sm:$0xff]
          %v331 = vld [vmem:[#allocation2 + $0xa8] sm:$0xff]
          %v332 = vld [vmem:[#allocation2 + $0xb0] sm:$0xff]
          %v333 = vld [vmem:[#allocation2 + $0xb8] sm:$0xff]
          %v334 = vld [vmem:[%s230] sm:$0xf]
          %v335 = vld [vmem:[%s230 + $0x4] sm:$0xf]
          %v336 = vld [vmem:[%s230 + $0x8] sm:$0xf]
          %v337 = vld [vmem:[%s230 + $0xc] sm:$0xf]
          %v338 = vld [vmem:[%s230 + $0x10] sm:$0xf]
          %v339 = vld [vmem:[%s230 + $0x14] sm:$0xf]
          %v340 = vld [vmem:[%s239] sm:$0xff]
          %v341 = vld [vmem:[%s239 + $0x8] sm:$0xff]
          %v342 = vld [vmem:[%s239 + $0x10] sm:$0xff]
          %v343 = vld [vmem:[%s239 + $0x18] sm:$0xff]
          %v344 = vld [vmem:[%s239 + $0x20] sm:$0xff]
          %v345 = vld [vmem:[%s239 + $0x28] sm:$0xff]
          %v346 = vld [vmem:[%s239 + $0x30] sm:$0xff]
          %v347 = vld [vmem:[%s239 + $0x38] sm:$0xff]
          %v348 = vld [vmem:[%s239 + $0x40] sm:$0xff]
          %v349 = vld [vmem:[%s239 + $0x48] sm:$0xff]
          %v350 = vld [vmem:[%s239 + $0x50] sm:$0xff]
          %v351 = vld [vmem:[%s239 + $0x58] sm:$0xff]
          %v352 = vld [vmem:[%s239 + $0x60] sm:$0xff]
          %v353 = vld [vmem:[%s239 + $0x68] sm:$0xff]
          %v354 = vld [vmem:[%s239 + $0x70] sm:$0xff]
          %v355 = vld [vmem:[%s239 + $0x78] sm:$0xff]
          %v356 = vld [vmem:[%s239 + $0x80] sm:$0xff]
          %v357 = vld [vmem:[%s239 + $0x88] sm:$0xff]
          %v358 = vld [vmem:[%s239 + $0x90] sm:$0xff]
          %v359 = vld [vmem:[%s239 + $0x98] sm:$0xff]
          %v360 = vld [vmem:[%s239 + $0xa0] sm:$0xff]
          %v361 = vld [vmem:[%s239 + $0xa8] sm:$0xff]
          %v362 = vld [vmem:[%s239 + $0xb0] sm:$0xff]
          %v363 = vld [vmem:[%s239 + $0xb8] sm:$0xff]
          %v364 = vld [vmem:[%s239 + $0xc0] sm:$0xff]
          %v365 = vld [vmem:[%s239 + $0xc8] sm:$0xff]
          %v366 = vld [vmem:[%s239 + $0xd0] sm:$0xff]
          %v367 = vld [vmem:[%s239 + $0xd8] sm:$0xff]
          %v368 = vld [vmem:[%s239 + $0xe0] sm:$0xff]
          %v369 = vld [vmem:[%s239 + $0xe8] sm:$0xff]
          %v370 = vld [vmem:[%s239 + $0xf0] sm:$0xff]
          %v371 = vld [vmem:[%s239 + $0xf8] sm:$0xff]
          %v378 = vunpack.c.l.b16 %v334
          %v379 = vunpack.c.l.b16 %v335
          %v380 = vunpack.c.l.b16 %v336
          %v381 = vunpack.c.l.b16 %v337
          %v382 = vunpack.c.l.b16 %v338
          %v383 = vunpack.c.l.b16 %v339
          %v384 = vpack.c.b16 %v379, %v378
          %v385 = vpack.c.b16 %v381, %v380
          %v386 = vpack.c.b16 %v383, %v382
          %v422 = vunpack.c.l.b16 %v340
          %v423 = vunpack.c.h.b16 %v340
          %v424 = vunpack.c.l.b16 %v341
          %v425 = vunpack.c.h.b16 %v341
          %v426 = vunpack.c.l.b16 %v342
          %v427 = vunpack.c.h.b16 %v342
          %v428 = vunpack.c.l.b16 %v343
          %v429 = vunpack.c.h.b16 %v343
          %v430 = vunpack.c.l.b16 %v344
          %v431 = vunpack.c.h.b16 %v344
          %v432 = vunpack.c.l.b16 %v345
          %v433 = vunpack.c.h.b16 %v345
          %v434 = vunpack.c.l.b16 %v346
          %v435 = vunpack.c.h.b16 %v346
          %v436 = vunpack.c.l.b16 %v347
          %v437 = vunpack.c.h.b16 %v347
          %v438 = vunpack.c.l.b16 %v348
          %v439 = vunpack.c.h.b16 %v348
          %v440 = vunpack.c.l.b16 %v349
          %v441 = vunpack.c.h.b16 %v349
          %v442 = vunpack.c.l.b16 %v350
          %v443 = vunpack.c.h.b16 %v350
          %v444 = vunpack.c.l.b16 %v351
          %v445 = vunpack.c.h.b16 %v351
          %v446 = vunpack.c.l.b16 %v352
          %v447 = vunpack.c.h.b16 %v352
          %v448 = vunpack.c.l.b16 %v353
          %v449 = vunpack.c.h.b16 %v353
          %v450 = vunpack.c.l.b16 %v354
          %v451 = vunpack.c.h.b16 %v354
          %v452 = vunpack.c.l.b16 %v355
          %v453 = vunpack.c.h.b16 %v355
          %v454 = vunpack.c.l.b16 %v356
          %v455 = vunpack.c.h.b16 %v356
          %v456 = vunpack.c.l.b16 %v357
          %v457 = vunpack.c.h.b16 %v357
          %v458 = vunpack.c.l.b16 %v358
          %v459 = vunpack.c.h.b16 %v358
          %v460 = vunpack.c.l.b16 %v359
          %v461 = vunpack.c.h.b16 %v359
          %v462 = vunpack.c.l.b16 %v360
          %v463 = vunpack.c.h.b16 %v360
          %v464 = vunpack.c.l.b16 %v361
          %v465 = vunpack.c.h.b16 %v361
          %v466 = vunpack.c.l.b16 %v362
          %v467 = vunpack.c.h.b16 %v362
          %v468 = vunpack.c.l.b16 %v363
          %v469 = vunpack.c.h.b16 %v363
          %v470 = vunpack.c.l.b16 %v364
          %v471 = vunpack.c.h.b16 %v364
          %v472 = vunpack.c.l.b16 %v365
          %v473 = vunpack.c.h.b16 %v365
          %v474 = vunpack.c.l.b16 %v366
          %v475 = vunpack.c.h.b16 %v366
          %v476 = vunpack.c.l.b16 %v367
          %v477 = vunpack.c.h.b16 %v367
          %v478 = vunpack.c.l.b16 %v368
          %v479 = vunpack.c.h.b16 %v368
          %v480 = vunpack.c.l.b16 %v369
          %v481 = vunpack.c.h.b16 %v369
          %v482 = vunpack.c.l.b16 %v370
          %v483 = vunpack.c.h.b16 %v370
          %v484 = vunpack.c.l.b16 %v371
          %v485 = vunpack.c.h.b16 %v371
          %v486 = vpack.c.b16 %v426, %v422
          %v487 = vpack.c.b16 %v427, %v423
          %v488 = vpack.c.b16 %v428, %v424
          %v489 = vpack.c.b16 %v429, %v425
          %v490 = vpack.c.b16 %v434, %v430
          %v491 = vpack.c.b16 %v435, %v431
          %v492 = vpack.c.b16 %v436, %v432
          %v493 = vpack.c.b16 %v437, %v433
          %v494 = vpack.c.b16 %v442, %v438
          %v495 = vpack.c.b16 %v443, %v439
          %v496 = vpack.c.b16 %v444, %v440
          %v497 = vpack.c.b16 %v445, %v441
          %v498 = vpack.c.b16 %v450, %v446
          %v499 = vpack.c.b16 %v451, %v447
          %v500 = vpack.c.b16 %v452, %v448
          %v501 = vpack.c.b16 %v453, %v449
          %v502 = vpack.c.b16 %v458, %v454
          %v503 = vpack.c.b16 %v459, %v455
          %v504 = vpack.c.b16 %v460, %v456
          %v505 = vpack.c.b16 %v461, %v457
          %v506 = vpack.c.b16 %v466, %v462
          %v507 = vpack.c.b16 %v467, %v463
          %v508 = vpack.c.b16 %v468, %v464
          %v509 = vpack.c.b16 %v469, %v465
          %v510 = vpack.c.b16 %v474, %v470
          %v511 = vpack.c.b16 %v475, %v471
          %v512 = vpack.c.b16 %v476, %v472
          %v513 = vpack.c.b16 %v477, %v473
          %v514 = vpack.c.b16 %v482, %v478
          %v515 = vpack.c.b16 %v483, %v479
          %v516 = vpack.c.b16 %v484, %v480
          %v517 = vpack.c.b16 %v485, %v481
          %550 = vmatprep.subr.bf16.mxu0 %v487
          %551 = vmatpush1.bf16.msra.mxu0 %v486
          %552 = vmatprep.subr.bf16.mxu0 %v491
          %553 = vmatpush1.bf16.msra.mxu0 %v490
          %554 = vmatprep.subr.bf16.mxu0 %v495
          %555 = vmatpush1.bf16.msra.mxu0 %v494
          %556 = vmatprep.subr.bf16.mxu0 %v499
          %557 = vmatpush1.bf16.msra.mxu0 %v498
          %558 = vmatprep.subr.bf16.mxu0 %v503
          %559 = vmatpush1.bf16.msra.mxu0 %v502
          %560 = vmatprep.subr.bf16.mxu0 %v507
          %561 = vmatpush1.bf16.msra.mxu0 %v506
          %562 = vmatprep.subr.bf16.mxu0 %v511
          %563 = vmatpush1.bf16.msra.mxu0 %v510
          %564 = vmatprep.subr.bf16.mxu0 %v515
          %565 = vmatpush1.bf16.msra.mxu0 %v514
          %566 = vmatprep.subr.bf16.mxu0 0
          %567 = vmatpush1.bf16.msra.mxu0 0
          %568 = vmatprep.subr.bf16.mxu0 0
          %569 = vmatpush1.bf16.msra.mxu0 0
          %570 = vmatprep.subr.bf16.mxu0 0
          %571 = vmatpush1.bf16.msra.mxu0 0
          %572 = vmatprep.subr.bf16.mxu0 0
          %573 = vmatpush1.bf16.msra.mxu0 0
          %574 = vmatprep.subr.bf16.mxu0 0
          %575 = vmatpush1.bf16.msra.mxu0 0
          %576 = vmatprep.subr.bf16.mxu0 0
          %577 = vmatpush1.bf16.msra.mxu0 0
          %578 = vmatprep.subr.bf16.mxu0 0
          %579 = vmatpush1.bf16.msra.mxu0 0
          %580 = vmatprep.subr.bf16.mxu0 0
          %581 = vmatpush1.bf16.msra.mxu0 0
          %582 = vmatprep.mubr.bf16.mxu0 0
          %583 = vmatmul.mubr.bf16.gmra.mrb[0].mxu0 %v384
          %v584 = vpop.f32.mrb[0].mxu0
          %v585 = vadd.f32 0.0, %v584
          %v586 = vpop.f32.mrb[0].mxu0
          %v587 = vadd.f32 0.0, %v586
          %v588 = vpop.f32.mrb[0].mxu0
          %v589 = vadd.f32 0.0, %v588
          %v590 = vpop.f32.mrb[0].mxu0
          %v591 = vadd.f32 0.0, %v590
          %592 = vmatprep.mubr.bf16.mxu0 0
          %593 = vmatmul.mubr.bf16.gmra.mrb[0].mxu0 %v385
          %v594 = vpop.f32.mrb[0].mxu0
          %v595 = vadd.f32 0.0, %v594
          %v596 = vpop.f32.mrb[0].mxu0
          %v597 = vadd.f32 0.0, %v596
          %v598 = vpop.f32.mrb[0].mxu0
          %v599 = vadd.f32 0.0, %v598
          %v600 = vpop.f32.mrb[0].mxu0
          %v601 = vadd.f32 0.0, %v600
          %602 = vmatprep.mubr.bf16.mxu0 0
          %603 = vmatmul.mubr.bf16.gmra.mrb[0].mxu0 %v386
          %v604 = vpop.f32.mrb[0].mxu0
          %v605 = vadd.f32 0.0, %v604
          %v606 = vpop.f32.mrb[0].mxu0
          %v607 = vadd.f32 0.0, %v606
          %v608 = vpop.f32.mrb[0].mxu0
          %v609 = vadd.f32 0.0, %v608
          %v610 = vpop.f32.mrb[0].mxu0
          %v611 = vadd.f32 0.0, %v610
          %612 = vdwg.mxu0
          %613 = vmatprep.subr.bf16.mxu0 %v489
          %614 = vmatpush1.bf16.msra.mxu0 %v488
          %615 = vmatprep.subr.bf16.mxu0 %v493
          %616 = vmatpush1.bf16.msra.mxu0 %v492
          %617 = vmatprep.subr.bf16.mxu0 %v497
          %618 = vmatpush1.bf16.msra.mxu0 %v496
          %619 = vmatprep.subr.bf16.mxu0 %v501
          %620 = vmatpush1.bf16.msra.mxu0 %v500
          %621 = vmatprep.subr.bf16.mxu0 %v505
          %622 = vmatpush1.bf16.msra.mxu0 %v504
          %623 = vmatprep.subr.bf16.mxu0 %v509
          %624 = vmatpush1.bf16.msra.mxu0 %v508
          %625 = vmatprep.subr.bf16.mxu0 %v513
          %626 = vmatpush1.bf16.msra.mxu0 %v512
          %627 = vmatprep.subr.bf16.mxu0 %v517
          %628 = vmatpush1.bf16.msra.mxu0 %v516
          %629 = vmatprep.subr.bf16.mxu0 0
          %630 = vmatpush1.bf16.msra.mxu0 0
          %631 = vmatprep.subr.bf16.mxu0 0
          %632 = vmatpush1.bf16.msra.mxu0 0
          %633 = vmatprep.subr.bf16.mxu0 0
          %634 = vmatpush1.bf16.msra.mxu0 0
          %635 = vmatprep.subr.bf16.mxu0 0
          %636 = vmatpush1.bf16.msra.mxu0 0
          %637 = vmatprep.subr.bf16.mxu0 0
          %638 = vmatpush1.bf16.msra.mxu0 0
          %639 = vmatprep.subr.bf16.mxu0 0
          %640 = vmatpush1.bf16.msra.mxu0 0
          %641 = vmatprep.subr.bf16.mxu0 0
          %642 = vmatpush1.bf16.msra.mxu0 0
          %643 = vmatprep.subr.bf16.mxu0 0
          %644 = vmatpush1.bf16.msra.mxu0 0
          %645 = vmatprep.mubr.bf16.mxu0 0
          %646 = vmatmul.mubr.bf16.gmra.mrb[0].mxu0 %v384
          %v647 = vpop.f32.mrb[0].mxu0
          %v648 = vadd.f32 0.0, %v647
          %v649 = vpop.f32.mrb[0].mxu0
          %v650 = vadd.f32 0.0, %v649
          %v651 = vpop.f32.mrb[0].mxu0
          %v652 = vadd.f32 0.0, %v651
          %v653 = vpop.f32.mrb[0].mxu0
          %v654 = vadd.f32 0.0, %v653
          %655 = vmatprep.mubr.bf16.mxu0 0
          %656 = vmatmul.mubr.bf16.gmra.mrb[0].mxu0 %v385
          %v657 = vpop.f32.mrb[0].mxu0
          %v658 = vadd.f32 0.0, %v657
          %v659 = vpop.f32.mrb[0].mxu0
          %v660 = vadd.f32 0.0, %v659
          %v661 = vpop.f32.mrb[0].mxu0
          %v662 = vadd.f32 0.0, %v661
          %v663 = vpop.f32.mrb[0].mxu0
          %v664 = vadd.f32 0.0, %v663
          %665 = vmatprep.mubr.bf16.mxu0 0
          %666 = vmatmul.mubr.bf16.gmra.mrb[0].mxu0 %v386
          %v667 = vpop.f32.mrb[0].mxu0
          %v668 = vadd.f32 0.0, %v667
          %v669 = vpop.f32.mrb[0].mxu0
          %v670 = vadd.f32 0.0, %v669
          %v671 = vpop.f32.mrb[0].mxu0
          %v672 = vadd.f32 0.0, %v671
          %v673 = vpop.f32.mrb[0].mxu0
          %v674 = vadd.f32 0.0, %v673
          %675 = vdwg.mxu0
          %v676 = vadd.f32 %v310, %v585
          %v677 = vadd.f32 %v311, %v587
          %v678 = vadd.f32 %v312, %v648
          %v679 = vadd.f32 %v313, %v650
          %v680 = vadd.f32 %v314, %v589
          %v681 = vadd.f32 %v315, %v591
          %v682 = vadd.f32 %v316, %v652
          %v683 = vadd.f32 %v317, %v654
          %v684 = vadd.f32 %v318, %v595
          %v685 = vadd.f32 %v319, %v597
          %v686 = vadd.f32 %v320, %v658
          %v687 = vadd.f32 %v321, %v660
          %v688 = vadd.f32 %v322, %v599
          %v689 = vadd.f32 %v323, %v601
          %v690 = vadd.f32 %v324, %v662
          %v691 = vadd.f32 %v325, %v664
          %v692 = vadd.f32 %v326, %v605
          %v693 = vadd.f32 %v327, %v607
          %v694 = vadd.f32 %v328, %v668
          %v695 = vadd.f32 %v329, %v670
          %v696 = vadd.f32 %v330, %v609
          %v697 = vadd.f32 %v331, %v611
          %v698 = vadd.f32 %v332, %v672
          %v699 = vadd.f32 %v333, %v674
          %700 = vst [vmem:[#allocation2] sm:$0xff] %v676
          %701 = vst [vmem:[#allocation2 + $0x8] sm:$0xff] %v677
          %702 = vst [vmem:[#allocation2 + $0x10] sm:$0xff] %v678
          %703 = vst [vmem:[#allocation2 + $0x18] sm:$0xff] %v679
          %704 = vst [vmem:[#allocation2 + $0x20] sm:$0xff] %v680
          %705 = vst [vmem:[#allocation2 + $0x28] sm:$0xff] %v681
          %706 = vst [vmem:[#allocation2 + $0x30] sm:$0xff] %v682
          %707 = vst [vmem:[#allocation2 + $0x38] sm:$0xff] %v683
          %708 = vst [vmem:[#allocation2 + $0x40] sm:$0xff] %v684
          %709 = vst [vmem:[#allocation2 + $0x48] sm:$0xff] %v685
          %710 = vst [vmem:[#allocation2 + $0x50] sm:$0xff] %v686
          %711 = vst [vmem:[#allocation2 + $0x58] sm:$0xff] %v687
          %712 = vst [vmem:[#allocation2 + $0x60] sm:$0xff] %v688
          %713 = vst [vmem:[#allocation2 + $0x68] sm:$0xff] %v689
          %714 = vst [vmem:[#allocation2 + $0x70] sm:$0xff] %v690
          %715 = vst [vmem:[#allocation2 + $0x78] sm:$0xff] %v691
          %716 = vst [vmem:[#allocation2 + $0x80] sm:$0xff] %v692
          %717 = vst [vmem:[#allocation2 + $0x88] sm:$0xff] %v693
          %718 = vst [vmem:[#allocation2 + $0x90] sm:$0xff] %v694
          %719 = vst [vmem:[#allocation2 + $0x98] sm:$0xff] %v695
          %720 = vst [vmem:[#allocation2 + $0xa0] sm:$0xff] %v696
          %721 = vst [vmem:[#allocation2 + $0xa8] sm:$0xff] %v697
          %722 = vst [vmem:[#allocation2 + $0xb0] sm:$0xff] %v698
          %723 = vst [vmem:[#allocation2 + $0xb8] sm:$0xff] %v699
        $region44: #{tpu_custom_call.1} parent=27 // pred_fallthru
          _
        %p724 = scmp.eq.s32.totalorder %s34, 2
        // Predicated region
        $region45: #{tpu_custom_call.1} parent=27 // pred_check
          %p725 = pneg %p724
        $region46: #{tpu_custom_call.1} parent=27 // pred_check_branch
          %727 = sbr.rel (%p725) target = $region48
        $region47: #{tpu_custom_call.1} parent=27 // pred_region
          %v728 = vld [vmem:[#allocation2] sm:$0xff]
          %v729 = vld [vmem:[#allocation2 + $0x8] sm:$0xff]
          %v730 = vld [vmem:[#allocation2 + $0x10] sm:$0xff]
          %v731 = vld [vmem:[#allocation2 + $0x18] sm:$0xff]
          %v732 = vld [vmem:[#allocation2 + $0x20] sm:$0xff]
          %v733 = vld [vmem:[#allocation2 + $0x28] sm:$0xff]
          %v734 = vld [vmem:[#allocation2 + $0x30] sm:$0xff]
          %v735 = vld [vmem:[#allocation2 + $0x38] sm:$0xff]
          %v736 = vld [vmem:[#allocation2 + $0x40] sm:$0xff]
          %v737 = vld [vmem:[#allocation2 + $0x48] sm:$0xff]
          %v738 = vld [vmem:[#allocation2 + $0x50] sm:$0xff]
          %v739 = vld [vmem:[#allocation2 + $0x58] sm:$0xff]
          %v740 = vld [vmem:[#allocation2 + $0x60] sm:$0xff]
          %v741 = vld [vmem:[#allocation2 + $0x68] sm:$0xff]
          %v742 = vld [vmem:[#allocation2 + $0x70] sm:$0xff]
          %v743 = vld [vmem:[#allocation2 + $0x78] sm:$0xff]
          %v744 = vld [vmem:[#allocation2 + $0x80] sm:$0xff]
          %v745 = vld [vmem:[#allocation2 + $0x88] sm:$0xff]
          %v746 = vld [vmem:[#allocation2 + $0x90] sm:$0xff]
          %v747 = vld [vmem:[#allocation2 + $0x98] sm:$0xff]
          %v748 = vld [vmem:[#allocation2 + $0xa0] sm:$0xff]
          %v749 = vld [vmem:[#allocation2 + $0xa8] sm:$0xff]
          %v750 = vld [vmem:[#allocation2 + $0xb0] sm:$0xff]
          %v751 = vld [vmem:[#allocation2 + $0xb8] sm:$0xff]
          %v752 = vpack.c.bf16 %v732, %v728
          %v753 = vpack.c.bf16 %v733, %v729
          %v754 = vpack.c.bf16 %v734, %v730
          %v755 = vpack.c.bf16 %v735, %v731
          %v756 = vpack.c.bf16 %v740, %v736
          %v757 = vpack.c.bf16 %v741, %v737
          %v758 = vpack.c.bf16 %v742, %v738
          %v759 = vpack.c.bf16 %v743, %v739
          %v760 = vpack.c.bf16 %v748, %v744
          %v761 = vpack.c.bf16 %v749, %v745
          %v762 = vpack.c.bf16 %v750, %v746
          %v763 = vpack.c.bf16 %v751, %v747
          %v776 = vunpack.c.l.b16 %v752
          %v777 = vunpack.c.l.b16 %v753
          %v778 = vunpack.c.l.b16 %v754
          %v779 = vunpack.c.l.b16 %v755
          %v780 = vunpack.c.h.b16 %v752
          %v781 = vunpack.c.h.b16 %v753
          %v782 = vunpack.c.h.b16 %v754
          %v783 = vunpack.c.h.b16 %v755
          %v784 = vunpack.c.l.b16 %v756
          %v785 = vunpack.c.l.b16 %v757
          %v786 = vunpack.c.l.b16 %v758
          %v787 = vunpack.c.l.b16 %v759
          %v788 = vunpack.c.h.b16 %v756
          %v789 = vunpack.c.h.b16 %v757
          %v790 = vunpack.c.h.b16 %v758
          %v791 = vunpack.c.h.b16 %v759
          %v792 = vunpack.c.l.b16 %v760
          %v793 = vunpack.c.l.b16 %v761
          %v794 = vunpack.c.l.b16 %v762
          %v795 = vunpack.c.l.b16 %v763
          %v796 = vunpack.c.h.b16 %v760
          %v797 = vunpack.c.h.b16 %v761
          %v798 = vunpack.c.h.b16 %v762
          %v799 = vunpack.c.h.b16 %v763
          %v800 = vpack.c.b16 %v777, %v776
          %v801 = vpack.c.b16 %v779, %v778
          %v802 = vpack.c.b16 %v781, %v780
          %v803 = vpack.c.b16 %v783, %v782
          %v804 = vpack.c.b16 %v785, %v784
          %v805 = vpack.c.b16 %v787, %v786
          %v806 = vpack.c.b16 %v789, %v788
          %v807 = vpack.c.b16 %v791, %v790
          %v808 = vpack.c.b16 %v793, %v792
          %v809 = vpack.c.b16 %v795, %v794
          %v810 = vpack.c.b16 %v797, %v796
          %v811 = vpack.c.b16 %v799, %v798
          %824 = vst [vmem:[%s264] sm:$0xff] %v800
          %825 = vst [vmem:[%s264 + $0x8] sm:$0xff] %v801
          %826 = vst [vmem:[%s264 + $0x10] sm:$0xff] %v802
          %827 = vst [vmem:[%s264 + $0x18] sm:$0xff] %v803
          %828 = vst [vmem:[%s264 + $0x20] sm:$0xff] %v804
          %829 = vst [vmem:[%s264 + $0x28] sm:$0xff] %v805
          %830 = vst [vmem:[%s264 + $0x30] sm:$0xff] %v806
          %831 = vst [vmem:[%s264 + $0x38] sm:$0xff] %v807
          %832 = vst [vmem:[%s264 + $0x40] sm:$0xff] %v808
          %833 = vst [vmem:[%s264 + $0x48] sm:$0xff] %v809
          %834 = vst [vmem:[%s264 + $0x50] sm:$0xff] %v810
          %835 = vst [vmem:[%s264 + $0x58] sm:$0xff] %v811
        $region48: #{tpu_custom_call.1} parent=27 // pred_fallthru
          _
        %s836 = sand.u32 %s130, 1
        %s837 = scalar_lea.sflag [#allocation7], %s836
        %s838 = sand.u32 %s130, 1
        %s839 = smul.addr %s838, 96
        %s840 = scalar_lea.vmem [#allocation10], %s839
        // Predicated region
        $region49: #{tpu_custom_call.1} parent=27 // pred_check
          %p841 = pneg %p140
        $region50: #{tpu_custom_call.1} parent=27 // pred_check_branch
          %843 = sbr.rel (%p841) target = $region52
        $region51: #{tpu_custom_call.1} parent=27 // pred_region
          %s844 = smul.u32 6, %s32
          %s846 = ssub.s32 1536, 1536
          %847 = vsyncadd %s837, %s846
          %s848 = smul.addr %s844, 4
          %s849 = smul.addr %s33, 24
          %s850 = sadd.s32 %s848, %s849
          %s851 = smul.addr %s850, 64
          %s852 = scalar_lea.hbm %s3, %s851
          %s853 = sshll.u32 %s840, 4
          %s854 = int_to_ptr.vmem [resolvable:$true] %s853
          %859 = dma.vmem_to_hbm [thread:$0]  %s854, 1536, %s852, %s837, 256, 256, 16
        $region52: #{tpu_custom_call.1} parent=27 // pred_fallthru
          _
      $region28: #{tpu_custom_call.1} parent=5 // pred_fallthru
        _
      %p860 = scmp.le.s32.totalorder 2, %s22
      // Predicated region
      $region53: #{tpu_custom_call.1} parent=5 // pred_check
        %p861 = pneg %p860
      $region54: #{tpu_custom_call.1} parent=5 // pred_check_branch
        %863 = sbr.rel (%p861) target = $region56
      $region55: #{tpu_custom_call.1} parent=5 // pred_region
        %s864 = ssub.s32 %s22, 2
        // Predicated region
        $region57: #{tpu_custom_call.1} parent=55 // pred_check
          %p865 = pneg %p146
        $region58: #{tpu_custom_call.1} parent=55 // pred_check_branch
          %867 = sbr.rel (%p865) target = $region60
        $region59: #{tpu_custom_call.1} parent=55 // pred_region
          %s868 = sand.u32 %s131, 1
          %s869 = scalar_lea.sflag [#allocation7], %s868
          %s870 = sand.u32 %s131, 1
          %s871 = smul.addr %s870, 96
          %s872 = scalar_lea.vmem [#allocation10], %s871
          %873 = dma.done %s869, 1536
        $region60: #{tpu_custom_call.1} parent=55 // pred_fallthru
          _
      $region56: #{tpu_custom_call.1} parent=5 // pred_fallthru
        _
    $region6: #{tpu_custom_call.1} parent=1 // loop_footer
      %s26 = sadd.s32 1, %s22
    $region7: #{tpu_custom_call.1} parent=1 // loop_footer_branch
      %21 = sbr.rel target = $region3
    $region8: #{tpu_custom_call.1} parent=1 // loop_exit
      _
    %874 = vsyncpa [#allocation6], 1
    %s875 = scalar_lea.sflag [#allocation6], 1
    %876 = vsyncpa %s875, 1
    %877 = vsyncpa [#allocation9], 1
    %s878 = scalar_lea.sflag [#allocation9], 1
    %879 = vsyncpa %s878, 1
    %880 = vsyncpa [#allocation7], 1
    %s881 = scalar_lea.sflag [#allocation7], 1
    %882 = vsyncpa %s881, 1

</llo_original>
